<compile_context>
chip_gen: v7x
topology: tpu7x:2x2x1
jax: 0.10.0
libtpu: 0.0.40
codegen_flags: <defaults>
</compile_context>

<pallas_src>
import functools

import jax
import jax.numpy as jnp
from jax.experimental import pallas as pl
from jax.experimental.pallas import tpu as pltpu

D_PAD = 128        # lane-dense padded feature width for every layer
TILE_B_MAX = 256   # batch tile; comfortably fits double-buffered in VMEM on v5e/v6e/v7x
N_LAYERS = 5


def actor_kernel(x_ref, w_ref, b_ref, o_ref):
    """x_ref: (TILE_B, D_PAD) f32
       w_ref: (5, D_PAD, D_PAD) f32 or bf16 (zero-padded transposed weights)
       b_ref: (5, 1, D_PAD) f32     (zero-padded biases)
       o_ref: (TILE_B, D_PAD) f32   (caller slices [:, :output_size])."""
    h = x_ref[...]
    # 4 hidden layers: Linear + ReLU (fused, intermediates stay in vregs/VMEM)
    for l in range(N_LAYERS - 1):
        h = jnp.dot(h.astype(w_ref.dtype), w_ref[l],
                    preferred_element_type=jnp.float32) + b_ref[l]
        h = jnp.maximum(h, 0.0)
    # output layer: Linear + tanh
    h = jnp.dot(h.astype(w_ref.dtype), w_ref[N_LAYERS - 1],
                preferred_element_type=jnp.float32) + b_ref[N_LAYERS - 1]
    o_ref[...] = jnp.tanh(h)


def pack_actor_params(params, weight_dtype=jnp.float32):
    """Pack per-layer (W_t (in,out), b (out,)) into padded slabs.  Do this ONCE per
    parameter update, not per forward call."""
    n = len(params)
    w_slab = jnp.zeros((n, D_PAD, D_PAD), weight_dtype)
    b_slab = jnp.zeros((n, 1, D_PAD), jnp.float32)
    for l, (w, b) in enumerate(params):
        fin, fout = w.shape
        w_slab = w_slab.at[l, :fin, :fout].set(w.astype(weight_dtype))
        b_slab = b_slab.at[l, 0, :fout].set(jnp.reshape(b, (-1,)).astype(jnp.float32))
    return w_slab, b_slab


@functools.partial(jax.jit, static_argnames=("output_size",))
def actor_forward_packed(state, w_slab, b_slab, *, output_size):
    """state: (B, input_size) f32; w_slab/b_slab from pack_actor_params.
    Returns (B, output_size) f32."""
    B, in_size = state.shape

    # Round batch up to a multiple of 8 (sublanes), then to a multiple of the tile.
    b_pad = max(8, ((B + 7) // 8) * 8)
    tile_b = min(TILE_B_MAX, b_pad)
    b_pad = ((b_pad + tile_b - 1) // tile_b) * tile_b
    grid = (b_pad // tile_b,)

    # Zero-pad state to (b_pad, D_PAD) so the kernel sees a lane-dense, uniform layout.
    x = jnp.zeros((b_pad, D_PAD), jnp.float32)
    x = x.at[:B, :in_size].set(state.astype(jnp.float32))

    out_padded = pl.pallas_call(
        actor_kernel,
        out_shape=jax.ShapeDtypeStruct((b_pad, D_PAD), jnp.float32),
        grid=grid,
        in_specs=[
            pl.BlockSpec((tile_b, D_PAD), lambda i: (i, 0)),                 # state tile
            pl.BlockSpec((N_LAYERS, D_PAD, D_PAD), lambda i: (0, 0, 0)),     # weights: resident
            pl.BlockSpec((N_LAYERS, 1, D_PAD), lambda i: (0, 0, 0)),         # biases: resident
        ],
        out_specs=pl.BlockSpec((tile_b, D_PAD), lambda i: (i, 0)),
        compiler_params=pltpu.CompilerParams(
            dimension_semantics=("parallel",)),   # v7x: split batch across the 2 TensorCores
    )(x, w_slab, b_slab)

    return out_padded[:B, :output_size]


def init_actor_params(key, input_size, hidden_size, output_size):
    """PyTorch nn.Linear-style init: U(-1/sqrt(fan_in), 1/sqrt(fan_in)).
    Weights stored transposed as (in, out); biases as (out,)."""
    dims = [input_size] + list(hidden_size) + [output_size]
    params = []
    for i in range(len(dims) - 1):
        fan_in, fan_out = dims[i], dims[i + 1]
        key, kw, kb = jax.random.split(key, 3)
        bound = 1.0 / jnp.sqrt(jnp.float32(fan_in))
        w = jax.random.uniform(kw, (fan_in, fan_out), jnp.float32, -bound, bound)
        b = jax.random.uniform(kb, (fan_out,), jnp.float32, -bound, bound)
        params.append((w, b))
    return params


def actor_reference(state, params):
    """Pure-JAX reference for correctness checking."""
    x = state
    for i, (w, b) in enumerate(params):
        x = x @ w + b
        if i < len(params) - 1:
            x = jnp.maximum(x, 0.0)
        else:
            x = jnp.tanh(x)
    return x


if __name__ == "__main__":
    input_size = 16
    hidden_size = (32, 32, 32, 32)
    output_size = 8

    key = jax.random.PRNGKey(0)
    key, kx, kp = jax.random.split(key, 3)
    params = init_actor_params(kp, input_size, hidden_size, output_size)

    # Pack once (amortized across all forward calls).
    w_f32, b_f32 = pack_actor_params(params, jnp.float32)

    # --- small batch (RL rollout style) ---
    batch = 8
    state = jax.random.normal(kx, (batch, input_size), jnp.float32)
    out = jax.block_until_ready(
        actor_forward_packed(state, w_f32, b_f32, output_size=output_size))
    ref = actor_reference(state, params)
    assert out.shape == (batch, output_size)
    assert jnp.allclose(out, ref, atol=1e-5, rtol=1e-5), "f32 small-batch mismatch"

    # --- larger batch exercising the batch grid, 'parallel' axis and padding path ---
    key, kx2 = jax.random.split(key)
    batch2 = 300  # not a multiple of 8 or the tile
    state2 = jax.random.normal(kx2, (batch2, input_size), jnp.float32)
    out2 = jax.block_until_ready(
        actor_forward_packed(state2, w_f32, b_f32, output_size=output_size))
    ref2 = actor_reference(state2, params)
    assert out2.shape == (batch2, output_size)
    assert jnp.allclose(out2, ref2, atol=1e-5, rtol=1e-5), "f32 tiled-batch mismatch"

    # --- bf16 weight storage (MXU-native); accumulation / bias / ReLU / tanh stay f32 ---
    w_bf16, b_bf16 = pack_actor_params(params, jnp.bfloat16)
    out3 = jax.block_until_ready(
        actor_forward_packed(state2, w_bf16, b_bf16, output_size=output_size))
    assert jnp.allclose(out3, ref2, atol=5e-2, rtol=5e-2), "bf16 mismatch"

    print("KERNEL_OK")
</pallas_src>

<mosaic_0001>
module attributes {stable_mosaic.version = 11 : i64} {
  func.func @actor_kernel(%arg0: i32, %arg1: memref<8x128xf32, #tpu.memory_space<vmem>>, %arg2: memref<5x128x128xf32, #tpu.memory_space<vmem>>, %arg3: memref<5x1x128xf32, #tpu.memory_space<vmem>>, %arg4: memref<8x128xf32, #tpu.memory_space<vmem>>) attributes {dimension_semantics = [#tpu.dimension_semantics<parallel>], iteration_bounds = array<i64: 1>, scalar_prefetch = 0 : i64, scratch_operands = 0 : i64, tpu.core_type = #tpu.core_type<tc>, window_params = [{transform_indices = @transform_0, window_bounds = array<i64: 8, 128>}, {pipeline_mode = #tpu.pipeline_mode<synchronous>, transform_indices = @transform_1, window_bounds = array<i64: 5, 128, 128>}, {pipeline_mode = #tpu.pipeline_mode<synchronous>, transform_indices = @transform_2, window_bounds = array<i64: 5, 1, 128>}, {transform_indices = @transform_3, window_bounds = array<i64: 8, 128>}]} {
    %c0 = arith.constant 0 : index
    %c0_0 = arith.constant 0 : index
    %0 = vector.load %arg1[%c0, %c0_0] : memref<8x128xf32, #tpu.memory_space<vmem>>, vector<8x128xf32>
    %c0_1 = arith.constant 0 : index
    %c0_2 = arith.constant 0 : index
    %c0_3 = arith.constant 0 : index
    %1 = vector.load %arg2[%c0_1, %c0_2, %c0_3] : memref<5x128x128xf32, #tpu.memory_space<vmem>>, vector<1x128x128xf32>
    %2 = vector.shape_cast %1 : vector<1x128x128xf32> to vector<128x128xf32>
    %cst = arith.constant dense<0.000000e+00> : vector<8x128xf32>
    %3 = tpu.matmul %0, %2, %cst {dimension_numbers = #tpu.dot_dimension_numbers<[1], [0], [0], [1], [0, 0, 1, 1], [], []>} : vector<8x128xf32>, vector<128x128xf32>, vector<8x128xf32> -> vector<8x128xf32>
    %c0_4 = arith.constant 0 : index
    %c0_5 = arith.constant 0 : index
    %c0_6 = arith.constant 0 : index
    %4 = vector.load %arg3[%c0_4, %c0_5, %c0_6] : memref<5x1x128xf32, #tpu.memory_space<vmem>>, vector<1x1x128xf32>
    %5 = vector.shape_cast %4 : vector<1x1x128xf32> to vector<1x128xf32>
    %6 = vector.broadcast %5 : vector<1x128xf32> to vector<8x128xf32>
    %7 = arith.addf %3, %6 : vector<8x128xf32>
    %cst_7 = arith.constant 0.000000e+00 : f32
    %8 = vector.broadcast %cst_7 : f32 to vector<8x128xf32>
    %9 = arith.maximumf %7, %8 : vector<8x128xf32>
    %c1 = arith.constant 1 : index
    %c0_8 = arith.constant 0 : index
    %c0_9 = arith.constant 0 : index
    %10 = vector.load %arg2[%c1, %c0_8, %c0_9] : memref<5x128x128xf32, #tpu.memory_space<vmem>>, vector<1x128x128xf32>
    %11 = vector.shape_cast %10 : vector<1x128x128xf32> to vector<128x128xf32>
    %cst_10 = arith.constant dense<0.000000e+00> : vector<8x128xf32>
    %12 = tpu.matmul %9, %11, %cst_10 {dimension_numbers = #tpu.dot_dimension_numbers<[1], [0], [0], [1], [0, 0, 1, 1], [], []>} : vector<8x128xf32>, vector<128x128xf32>, vector<8x128xf32> -> vector<8x128xf32>
    %c1_11 = arith.constant 1 : index
    %c0_12 = arith.constant 0 : index
    %c0_13 = arith.constant 0 : index
    %13 = vector.load %arg3[%c1_11, %c0_12, %c0_13] : memref<5x1x128xf32, #tpu.memory_space<vmem>>, vector<1x1x128xf32>
    %14 = vector.shape_cast %13 : vector<1x1x128xf32> to vector<1x128xf32>
    %15 = vector.broadcast %14 : vector<1x128xf32> to vector<8x128xf32>
    %16 = arith.addf %12, %15 : vector<8x128xf32>
    %cst_14 = arith.constant 0.000000e+00 : f32
    %17 = vector.broadcast %cst_14 : f32 to vector<8x128xf32>
    %18 = arith.maximumf %16, %17 : vector<8x128xf32>
    %c2 = arith.constant 2 : index
    %c0_15 = arith.constant 0 : index
    %c0_16 = arith.constant 0 : index
    %19 = vector.load %arg2[%c2, %c0_15, %c0_16] : memref<5x128x128xf32, #tpu.memory_space<vmem>>, vector<1x128x128xf32>
    %20 = vector.shape_cast %19 : vector<1x128x128xf32> to vector<128x128xf32>
    %cst_17 = arith.constant dense<0.000000e+00> : vector<8x128xf32>
    %21 = tpu.matmul %18, %20, %cst_17 {dimension_numbers = #tpu.dot_dimension_numbers<[1], [0], [0], [1], [0, 0, 1, 1], [], []>} : vector<8x128xf32>, vector<128x128xf32>, vector<8x128xf32> -> vector<8x128xf32>
    %c2_18 = arith.constant 2 : index
    %c0_19 = arith.constant 0 : index
    %c0_20 = arith.constant 0 : index
    %22 = vector.load %arg3[%c2_18, %c0_19, %c0_20] : memref<5x1x128xf32, #tpu.memory_space<vmem>>, vector<1x1x128xf32>
    %23 = vector.shape_cast %22 : vector<1x1x128xf32> to vector<1x128xf32>
    %24 = vector.broadcast %23 : vector<1x128xf32> to vector<8x128xf32>
    %25 = arith.addf %21, %24 : vector<8x128xf32>
    %cst_21 = arith.constant 0.000000e+00 : f32
    %26 = vector.broadcast %cst_21 : f32 to vector<8x128xf32>
    %27 = arith.maximumf %25, %26 : vector<8x128xf32>
    %c3 = arith.constant 3 : index
    %c0_22 = arith.constant 0 : index
    %c0_23 = arith.constant 0 : index
    %28 = vector.load %arg2[%c3, %c0_22, %c0_23] : memref<5x128x128xf32, #tpu.memory_space<vmem>>, vector<1x128x128xf32>
    %29 = vector.shape_cast %28 : vector<1x128x128xf32> to vector<128x128xf32>
    %cst_24 = arith.constant dense<0.000000e+00> : vector<8x128xf32>
    %30 = tpu.matmul %27, %29, %cst_24 {dimension_numbers = #tpu.dot_dimension_numbers<[1], [0], [0], [1], [0, 0, 1, 1], [], []>} : vector<8x128xf32>, vector<128x128xf32>, vector<8x128xf32> -> vector<8x128xf32>
    %c3_25 = arith.constant 3 : index
    %c0_26 = arith.constant 0 : index
    %c0_27 = arith.constant 0 : index
    %31 = vector.load %arg3[%c3_25, %c0_26, %c0_27] : memref<5x1x128xf32, #tpu.memory_space<vmem>>, vector<1x1x128xf32>
    %32 = vector.shape_cast %31 : vector<1x1x128xf32> to vector<1x128xf32>
    %33 = vector.broadcast %32 : vector<1x128xf32> to vector<8x128xf32>
    %34 = arith.addf %30, %33 : vector<8x128xf32>
    %cst_28 = arith.constant 0.000000e+00 : f32
    %35 = vector.broadcast %cst_28 : f32 to vector<8x128xf32>
    %36 = arith.maximumf %34, %35 : vector<8x128xf32>
    %c4 = arith.constant 4 : index
    %c0_29 = arith.constant 0 : index
    %c0_30 = arith.constant 0 : index
    %37 = vector.load %arg2[%c4, %c0_29, %c0_30] : memref<5x128x128xf32, #tpu.memory_space<vmem>>, vector<1x128x128xf32>
    %38 = vector.shape_cast %37 : vector<1x128x128xf32> to vector<128x128xf32>
    %cst_31 = arith.constant dense<0.000000e+00> : vector<8x128xf32>
    %39 = tpu.matmul %36, %38, %cst_31 {dimension_numbers = #tpu.dot_dimension_numbers<[1], [0], [0], [1], [0, 0, 1, 1], [], []>} : vector<8x128xf32>, vector<128x128xf32>, vector<8x128xf32> -> vector<8x128xf32>
    %c4_32 = arith.constant 4 : index
    %c0_33 = arith.constant 0 : index
    %c0_34 = arith.constant 0 : index
    %40 = vector.load %arg3[%c4_32, %c0_33, %c0_34] : memref<5x1x128xf32, #tpu.memory_space<vmem>>, vector<1x1x128xf32>
    %41 = vector.shape_cast %40 : vector<1x1x128xf32> to vector<1x128xf32>
    %42 = vector.broadcast %41 : vector<1x128xf32> to vector<8x128xf32>
    %43 = arith.addf %39, %42 : vector<8x128xf32>
    %44 = math.tanh %43 : vector<8x128xf32>
    %c0_35 = arith.constant 0 : index
    %c0_36 = arith.constant 0 : index
    %45 = vector.load %arg4[%c0_35, %c0_36] : memref<8x128xf32, #tpu.memory_space<vmem>>, vector<8x128xf32>
    tpu.vector_store %arg4[%c0_35, %c0_36], %44 {strides = array<i32>} : memref<8x128xf32, #tpu.memory_space<vmem>>, vector<8x128xf32>,
    return
  }
  func.func @transform_0(%arg0: i32) -> (i32, i32) {
    %c0_i32 = arith.constant 0 : i32
    %c0_i32_0 = arith.constant 0 : i32
    return %arg0, %c0_i32 : i32, i32
  }
  func.func @transform_1(%arg0: i32) -> (i32, i32, i32) {
    %c0_i32 = arith.constant 0 : i32
    %c0_i32_0 = arith.constant 0 : i32
    %c0_i32_1 = arith.constant 0 : i32
    %c0_i32_2 = arith.constant 0 : i32
    return %c0_i32, %c0_i32_0, %c0_i32_1 : i32, i32, i32
  }
  func.func @transform_2(%arg0: i32) -> (i32, i32, i32) {
    %c0_i32 = arith.constant 0 : i32
    %c0_i32_0 = arith.constant 0 : i32
    %c0_i32_1 = arith.constant 0 : i32
    %c0_i32_2 = arith.constant 0 : i32
    return %c0_i32, %c0_i32_0, %c0_i32_1 : i32, i32, i32
  }
  func.func @transform_3(%arg0: i32) -> (i32, i32) {
    %c0_i32 = arith.constant 0 : i32
    %c0_i32_0 = arith.constant 0 : i32
    return %arg0, %c0_i32 : i32, i32
  }
}

</mosaic_0001>

<llo_original>
// kernel: actor_forward_packed.1
$region0: #{actor_forward_packed.1}
  #allocation0 [shape = 'u32[]', space=smem, size = 0x4, offset = 0x4, fixed_abs, tag = 'smem constant byte address 0x4 - core index']
  #allocation1 [shape = 'u32[144,128]{1,0:T(1,128)}', space=vmem, size = 0x12000, scoped, tag = 'internal scratch']
  %s0 = inlined_call_operand.vmem [shape: f32[8,128], index: 0, kind: input, shape index: {}]
  %s1 = inlined_call_operand.hbm [shape: f32[5,128,128], index: 1, kind: input, shape index: {}]
  %s2 = inlined_call_operand.vmem [shape: f32[5,1,128], index: 2, kind: input, shape index: {}]
  %s3 = inlined_call_operand.hbm [shape: f32[8,128], index: 3, kind: output, shape index: {}]
  %s4 = sld [smem:[#allocation0]]
  $region26: #{actor_forward_packed.1} parent=0
    _
  %s6 = ssub.s32 1, %s4
  %s7 = scalar_select 0, %s6, %s4
  $region1: #{actor_forward_packed.1} parent=0
    #allocation2 [shape = 'u8[327680]{0}', space=vmem, size = 0x50000, scoped, tag = 'input window, operand 1, single buffered']
    #allocation3 [shape = 's32[1]{0}', space=sflag, size = 0x4, scoped, tag = 'scoped memory for actor_forward_packed.1']
    #allocation4 [shape = 's32[1]{0}', space=sflag, size = 0x4, scoped, tag = 'scoped memory for actor_forward_packed.1']
    #allocation5 [shape = 'u8[4096]{0}', space=vmem, size = 0x1000, scoped, tag = 'output window, operand 0, single buffered']
    %8 = vsyncpa [#allocation3], 0
    %9 = vsyncpa [#allocation4], 0
    // Predicated region
    $region2: #{actor_forward_packed.1} parent=1 // pred_check
      _
    $region3: #{actor_forward_packed.1} parent=1 // pred_check_branch
      %11 = sbr.rel (0) target = $region5
    $region4: #{actor_forward_packed.1} parent=1 // pred_region
      _
    $region5: #{actor_forward_packed.1} parent=1 // pred_fallthru
      _
    // Predicated region
    $region6: #{actor_forward_packed.1} parent=1 // pred_check
      _
    $region7: #{actor_forward_packed.1} parent=1 // pred_check_branch
      %13 = sbr.rel (0) target = $region9
    $region8: #{actor_forward_packed.1} parent=1 // pred_region
      %s15 = ssub.s32 10240, 10240
      %16 = vsyncadd [#allocation3], %s15
      %s17 = sshll.u32 [#allocation2], 4
      %s18 = int_to_ptr.vmem [resolvable:$true] %s17
      %23 = dma.hbm_to_vmem [thread:$0]  %s1, 10240, %s18, [#allocation3], 128, 128, 8
    $region9: #{actor_forward_packed.1} parent=1 // pred_fallthru
      _
    // Predicated region
    $region10: #{actor_forward_packed.1} parent=1 // pred_check
      _
    $region11: #{actor_forward_packed.1} parent=1 // pred_check_branch
      %25 = sbr.rel (0) target = $region13
    $region12: #{actor_forward_packed.1} parent=1 // pred_region
      _
    $region13: #{actor_forward_packed.1} parent=1 // pred_fallthru
      _
    // Predicated region
    $region14: #{actor_forward_packed.1} parent=1 // pred_check
      _
    $region15: #{actor_forward_packed.1} parent=1 // pred_check_branch
      %27 = sbr.rel (0) target = $region17
    $region16: #{actor_forward_packed.1} parent=1 // pred_region
      %28 = dma.done [#allocation3], 10240
    $region17: #{actor_forward_packed.1} parent=1 // pred_fallthru
      _
    %v29 = vld [vmem:[%s0] sm:$0xff]
    %v30 = vld [vmem:[#allocation2] sm:$0xff]
    %v31 = vld [vmem:[#allocation2 + $0x8] sm:$0xff]
    %v32 = vld [vmem:[#allocation2 + $0x10] sm:$0xff]
    %v33 = vld [vmem:[#allocation2 + $0x18] sm:$0xff]
    %v34 = vld [vmem:[#allocation2 + $0x20] sm:$0xff]
    %v35 = vld [vmem:[#allocation2 + $0x28] sm:$0xff]
    %v36 = vld [vmem:[#allocation2 + $0x30] sm:$0xff]
    %v37 = vld [vmem:[#allocation2 + $0x38] sm:$0xff]
    %v38 = vld [vmem:[#allocation2 + $0x40] sm:$0xff]
    %v39 = vld [vmem:[#allocation2 + $0x48] sm:$0xff]
    %v40 = vld [vmem:[#allocation2 + $0x50] sm:$0xff]
    %v41 = vld [vmem:[#allocation2 + $0x58] sm:$0xff]
    %v42 = vld [vmem:[#allocation2 + $0x60] sm:$0xff]
    %v43 = vld [vmem:[#allocation2 + $0x68] sm:$0xff]
    %v44 = vld [vmem:[#allocation2 + $0x70] sm:$0xff]
    %v45 = vld [vmem:[#allocation2 + $0x78] sm:$0xff]
    %v46 = vld [vmem:[%s2] sm:$0x1]
    %v48 = vlaneseq
    %v49 = vshrl.u32 %v48, 7
    %v50 = vsub.s32 0, %v49
    %v51 = vrot.slane %v46, %v50
    %53 = vmatprep.subr.mxu0 0.0
    %54 = vmatpush1.msra.mxu0 %v30
    %55 = vmatprep.subr.mxu0 0.0
    %56 = vmatpush1.msra.mxu0 %v31
    %57 = vmatprep.subr.mxu0 0.0
    %58 = vmatpush1.msra.mxu0 %v32
    %59 = vmatprep.subr.mxu0 0.0
    %60 = vmatpush1.msra.mxu0 %v33
    %61 = vmatprep.subr.mxu0 0.0
    %62 = vmatpush1.msra.mxu0 %v34
    %63 = vmatprep.subr.mxu0 0.0
    %64 = vmatpush1.msra.mxu0 %v35
    %65 = vmatprep.subr.mxu0 0.0
    %66 = vmatpush1.msra.mxu0 %v36
    %67 = vmatprep.subr.mxu0 0.0
    %68 = vmatpush1.msra.mxu0 %v37
    %69 = vmatprep.subr.mxu0 0.0
    %70 = vmatpush1.msra.mxu0 %v38
    %71 = vmatprep.subr.mxu0 0.0
    %72 = vmatpush1.msra.mxu0 %v39
    %73 = vmatprep.subr.mxu0 0.0
    %74 = vmatpush1.msra.mxu0 %v40
    %75 = vmatprep.subr.mxu0 0.0
    %76 = vmatpush1.msra.mxu0 %v41
    %77 = vmatprep.subr.mxu0 0.0
    %78 = vmatpush1.msra.mxu0 %v42
    %79 = vmatprep.subr.mxu0 0.0
    %80 = vmatpush1.msra.mxu0 %v43
    %81 = vmatprep.subr.mxu0 0.0
    %82 = vmatpush1.msra.mxu0 %v44
    %83 = vmatprep.subr.mxu0 0.0
    %84 = vmatpush1.msra.mxu0 %v45
    %85 = vmatprep.subr.mxu0 0.0
    %86 = vmatpush1.msra.mxu0 0.0
    %87 = vmatprep.subr.mxu0 0.0
    %88 = vmatpush1.msra.mxu0 0.0
    %89 = vmatprep.subr.mxu0 0.0
    %90 = vmatpush1.msra.mxu0 0.0
    %91 = vmatprep.subr.mxu0 0.0
    %92 = vmatpush1.msra.mxu0 0.0
    %93 = vmatprep.subr.mxu0 0.0
    %94 = vmatpush1.msra.mxu0 0.0
    %95 = vmatprep.subr.mxu0 0.0
    %96 = vmatpush1.msra.mxu0 0.0
    %97 = vmatprep.subr.mxu0 0.0
    %98 = vmatpush1.msra.mxu0 0.0
    %99 = vmatprep.subr.mxu0 0.0
    %100 = vmatpush1.msra.mxu0 0.0
    %101 = vmatprep.subr.mxu0 0.0
    %102 = vmatpush1.msra.mxu0 0.0
    %103 = vmatprep.subr.mxu0 0.0
    %104 = vmatpush1.msra.mxu0 0.0
    %105 = vmatprep.subr.mxu0 0.0
    %106 = vmatpush1.msra.mxu0 0.0
    %107 = vmatprep.subr.mxu0 0.0
    %108 = vmatpush1.msra.mxu0 0.0
    %109 = vmatprep.subr.mxu0 0.0
    %110 = vmatpush1.msra.mxu0 0.0
    %111 = vmatprep.subr.mxu0 0.0
    %112 = vmatpush1.msra.mxu0 0.0
    %113 = vmatprep.subr.mxu0 0.0
    %114 = vmatpush1.msra.mxu0 0.0
    %115 = vmatprep.subr.mxu0 0.0
    %116 = vmatpush1.msra.mxu0 0.0
    %117 = vmatprep.mubr.f32.mxu0 0.0
    %118 = vmatmul.mubr.f32.gmra.mrb[0].mxu0 %v29
    %v119 = vpop.f32.mrb[0].mxu0
    %v120 = vadd.f32 %v51, %v119
    %v121 = vpop.f32.mrb[0].mxu0
    %122 = vdwg.mxu0
    %v123 = vmax.f32 %v120, 0.0
    %s124 = scalar_lea.vmem [#allocation2], 128
    %v125 = vld [vmem:[%s124] sm:$0xff]
    %v126 = vld [vmem:[%s124 + $0x8] sm:$0xff]
    %v127 = vld [vmem:[%s124 + $0x10] sm:$0xff]
    %v128 = vld [vmem:[%s124 + $0x18] sm:$0xff]
    %v129 = vld [vmem:[%s124 + $0x20] sm:$0xff]
    %v130 = vld [vmem:[%s124 + $0x28] sm:$0xff]
    %v131 = vld [vmem:[%s124 + $0x30] sm:$0xff]
    %v132 = vld [vmem:[%s124 + $0x38] sm:$0xff]
    %v133 = vld [vmem:[%s124 + $0x40] sm:$0xff]
    %v134 = vld [vmem:[%s124 + $0x48] sm:$0xff]
    %v135 = vld [vmem:[%s124 + $0x50] sm:$0xff]
    %v136 = vld [vmem:[%s124 + $0x58] sm:$0xff]
    %v137 = vld [vmem:[%s124 + $0x60] sm:$0xff]
    %v138 = vld [vmem:[%s124 + $0x68] sm:$0xff]
    %v139 = vld [vmem:[%s124 + $0x70] sm:$0xff]
    %v140 = vld [vmem:[%s124 + $0x78] sm:$0xff]
    %s141 = scalar_lea.vmem %s2, 1
    %v142 = vld [vmem:[%s141] sm:$0x1]
    %v144 = vlaneseq
    %v145 = vshrl.u32 %v144, 7
    %v146 = vsub.s32 0, %v145
    %v147 = vrot.slane %v142, %v146
    %149 = vmatprep.subr.mxu0 0.0
    %150 = vmatpush1.msra.mxu0 %v125
    %151 = vmatprep.subr.mxu0 0.0
    %152 = vmatpush1.msra.mxu0 %v126
    %153 = vmatprep.subr.mxu0 0.0
    %154 = vmatpush1.msra.mxu0 %v127
    %155 = vmatprep.subr.mxu0 0.0
    %156 = vmatpush1.msra.mxu0 %v128
    %157 = vmatprep.subr.mxu0 0.0
    %158 = vmatpush1.msra.mxu0 %v129
    %159 = vmatprep.subr.mxu0 0.0
    %160 = vmatpush1.msra.mxu0 %v130
    %161 = vmatprep.subr.mxu0 0.0
    %162 = vmatpush1.msra.mxu0 %v131
    %163 = vmatprep.subr.mxu0 0.0
    %164 = vmatpush1.msra.mxu0 %v132
    %165 = vmatprep.subr.mxu0 0.0
    %166 = vmatpush1.msra.mxu0 %v133
    %167 = vmatprep.subr.mxu0 0.0
    %168 = vmatpush1.msra.mxu0 %v134
    %169 = vmatprep.subr.mxu0 0.0
    %170 = vmatpush1.msra.mxu0 %v135
    %171 = vmatprep.subr.mxu0 0.0
    %172 = vmatpush1.msra.mxu0 %v136
    %173 = vmatprep.subr.mxu0 0.0
    %174 = vmatpush1.msra.mxu0 %v137
    %175 = vmatprep.subr.mxu0 0.0
    %176 = vmatpush1.msra.mxu0 %v138
    %177 = vmatprep.subr.mxu0 0.0
    %178 = vmatpush1.msra.mxu0 %v139
    %179 = vmatprep.subr.mxu0 0.0
    %180 = vmatpush1.msra.mxu0 %v140
    %181 = vmatprep.subr.mxu0 0.0
    %182 = vmatpush1.msra.mxu0 0.0
    %183 = vmatprep.subr.mxu0 0.0
    %184 = vmatpush1.msra.mxu0 0.0
    %185 = vmatprep.subr.mxu0 0.0
    %186 = vmatpush1.msra.mxu0 0.0
    %187 = vmatprep.subr.mxu0 0.0
    %188 = vmatpush1.msra.mxu0 0.0
    %189 = vmatprep.subr.mxu0 0.0
    %190 = vmatpush1.msra.mxu0 0.0
    %191 = vmatprep.subr.mxu0 0.0
    %192 = vmatpush1.msra.mxu0 0.0
    %193 = vmatprep.subr.mxu0 0.0
    %194 = vmatpush1.msra.mxu0 0.0
    %195 = vmatprep.subr.mxu0 0.0
    %196 = vmatpush1.msra.mxu0 0.0
    %197 = vmatprep.subr.mxu0 0.0
    %198 = vmatpush1.msra.mxu0 0.0
    %199 = vmatprep.subr.mxu0 0.0
    %200 = vmatpush1.msra.mxu0 0.0
    %201 = vmatprep.subr.mxu0 0.0
    %202 = vmatpush1.msra.mxu0 0.0
    %203 = vmatprep.subr.mxu0 0.0
    %204 = vmatpush1.msra.mxu0 0.0
    %205 = vmatprep.subr.mxu0 0.0
    %206 = vmatpush1.msra.mxu0 0.0
    %207 = vmatprep.subr.mxu0 0.0
    %208 = vmatpush1.msra.mxu0 0.0
    %209 = vmatprep.subr.mxu0 0.0
    %210 = vmatpush1.msra.mxu0 0.0
    %211 = vmatprep.subr.mxu0 0.0
    %212 = vmatpush1.msra.mxu0 0.0
    %213 = vmatprep.mubr.f32.mxu0 0.0
    %214 = vmatmul.mubr.f32.gmra.mrb[0].mxu0 %v123
    %v215 = vpop.f32.mrb[0].mxu0
    %v216 = vadd.f32 %v147, %v215
    %v217 = vpop.f32.mrb[0].mxu0
    %218 = vdwg.mxu0
    %v219 = vmax.f32 %v216, 0.0
    %s220 = scalar_lea.vmem [#allocation2], 256
    %v221 = vld [vmem:[%s220] sm:$0xff]
    %v222 = vld [vmem:[%s220 + $0x8] sm:$0xff]
    %v223 = vld [vmem:[%s220 + $0x10] sm:$0xff]
    %v224 = vld [vmem:[%s220 + $0x18] sm:$0xff]
    %v225 = vld [vmem:[%s220 + $0x20] sm:$0xff]
    %v226 = vld [vmem:[%s220 + $0x28] sm:$0xff]
    %v227 = vld [vmem:[%s220 + $0x30] sm:$0xff]
    %v228 = vld [vmem:[%s220 + $0x38] sm:$0xff]
    %v229 = vld [vmem:[%s220 + $0x40] sm:$0xff]
    %v230 = vld [vmem:[%s220 + $0x48] sm:$0xff]
    %v231 = vld [vmem:[%s220 + $0x50] sm:$0xff]
    %v232 = vld [vmem:[%s220 + $0x58] sm:$0xff]
    %v233 = vld [vmem:[%s220 + $0x60] sm:$0xff]
    %v234 = vld [vmem:[%s220 + $0x68] sm:$0xff]
    %v235 = vld [vmem:[%s220 + $0x70] sm:$0xff]
    %v236 = vld [vmem:[%s220 + $0x78] sm:$0xff]
    %s237 = scalar_lea.vmem %s2, 2
    %v238 = vld [vmem:[%s237] sm:$0x1]
    %v240 = vlaneseq
    %v241 = vshrl.u32 %v240, 7
    %v242 = vsub.s32 0, %v241
    %v243 = vrot.slane %v238, %v242
    %245 = vmatprep.subr.mxu0 0.0
    %246 = vmatpush1.msra.mxu0 %v221
    %247 = vmatprep.subr.mxu0 0.0
    %248 = vmatpush1.msra.mxu0 %v222
    %249 = vmatprep.subr.mxu0 0.0
    %250 = vmatpush1.msra.mxu0 %v223
    %251 = vmatprep.subr.mxu0 0.0
    %252 = vmatpush1.msra.mxu0 %v224
    %253 = vmatprep.subr.mxu0 0.0
    %254 = vmatpush1.msra.mxu0 %v225
    %255 = vmatprep.subr.mxu0 0.0
    %256 = vmatpush1.msra.mxu0 %v226
    %257 = vmatprep.subr.mxu0 0.0
    %258 = vmatpush1.msra.mxu0 %v227
    %259 = vmatprep.subr.mxu0 0.0
    %260 = vmatpush1.msra.mxu0 %v228
    %261 = vmatprep.subr.mxu0 0.0
    %262 = vmatpush1.msra.mxu0 %v229
    %263 = vmatprep.subr.mxu0 0.0
    %264 = vmatpush1.msra.mxu0 %v230
    %265 = vmatprep.subr.mxu0 0.0
    %266 = vmatpush1.msra.mxu0 %v231
    %267 = vmatprep.subr.mxu0 0.0
    %268 = vmatpush1.msra.mxu0 %v232
    %269 = vmatprep.subr.mxu0 0.0
    %270 = vmatpush1.msra.mxu0 %v233
    %271 = vmatprep.subr.mxu0 0.0
    %272 = vmatpush1.msra.mxu0 %v234
    %273 = vmatprep.subr.mxu0 0.0
    %274 = vmatpush1.msra.mxu0 %v235
    %275 = vmatprep.subr.mxu0 0.0
    %276 = vmatpush1.msra.mxu0 %v236
    %277 = vmatprep.subr.mxu0 0.0
    %278 = vmatpush1.msra.mxu0 0.0
    %279 = vmatprep.subr.mxu0 0.0
    %280 = vmatpush1.msra.mxu0 0.0
    %281 = vmatprep.subr.mxu0 0.0
    %282 = vmatpush1.msra.mxu0 0.0
    %283 = vmatprep.subr.mxu0 0.0
    %284 = vmatpush1.msra.mxu0 0.0
    %285 = vmatprep.subr.mxu0 0.0
    %286 = vmatpush1.msra.mxu0 0.0
    %287 = vmatprep.subr.mxu0 0.0
    %288 = vmatpush1.msra.mxu0 0.0
    %289 = vmatprep.subr.mxu0 0.0
    %290 = vmatpush1.msra.mxu0 0.0
    %291 = vmatprep.subr.mxu0 0.0
    %292 = vmatpush1.msra.mxu0 0.0
    %293 = vmatprep.subr.mxu0 0.0
    %294 = vmatpush1.msra.mxu0 0.0
    %295 = vmatprep.subr.mxu0 0.0
    %296 = vmatpush1.msra.mxu0 0.0
    %297 = vmatprep.subr.mxu0 0.0
    %298 = vmatpush1.msra.mxu0 0.0
    %299 = vmatprep.subr.mxu0 0.0
    %300 = vmatpush1.msra.mxu0 0.0
    %301 = vmatprep.subr.mxu0 0.0
    %302 = vmatpush1.msra.mxu0 0.0
    %303 = vmatprep.subr.mxu0 0.0
    %304 = vmatpush1.msra.mxu0 0.0
    %305 = vmatprep.subr.mxu0 0.0
    %306 = vmatpush1.msra.mxu0 0.0
    %307 = vmatprep.subr.mxu0 0.0
    %308 = vmatpush1.msra.mxu0 0.0
    %309 = vmatprep.mubr.f32.mxu0 0.0
    %310 = vmatmul.mubr.f32.gmra.mrb[0].mxu0 %v219
    %v311 = vpop.f32.mrb[0].mxu0
    %v312 = vadd.f32 %v243, %v311
    %v313 = vpop.f32.mrb[0].mxu0
    %314 = vdwg.mxu0
    %v315 = vmax.f32 %v312, 0.0
    %s316 = scalar_lea.vmem [#allocation2], 384
    %v317 = vld [vmem:[%s316] sm:$0xff]
    %v318 = vld [vmem:[%s316 + $0x8] sm:$0xff]
    %v319 = vld [vmem:[%s316 + $0x10] sm:$0xff]
    %v320 = vld [vmem:[%s316 + $0x18] sm:$0xff]
    %v321 = vld [vmem:[%s316 + $0x20] sm:$0xff]
    %v322 = vld [vmem:[%s316 + $0x28] sm:$0xff]
    %v323 = vld [vmem:[%s316 + $0x30] sm:$0xff]
    %v324 = vld [vmem:[%s316 + $0x38] sm:$0xff]
    %v325 = vld [vmem:[%s316 + $0x40] sm:$0xff]
    %v326 = vld [vmem:[%s316 + $0x48] sm:$0xff]
    %v327 = vld [vmem:[%s316 + $0x50] sm:$0xff]
    %v328 = vld [vmem:[%s316 + $0x58] sm:$0xff]
    %v329 = vld [vmem:[%s316 + $0x60] sm:$0xff]
    %v330 = vld [vmem:[%s316 + $0x68] sm:$0xff]
    %v331 = vld [vmem:[%s316 + $0x70] sm:$0xff]
    %v332 = vld [vmem:[%s316 + $0x78] sm:$0xff]
    %s333 = scalar_lea.vmem %s2, 3
    %v334 = vld [vmem:[%s333] sm:$0x1]
    %v336 = vlaneseq
    %v337 = vshrl.u32 %v336, 7
    %v338 = vsub.s32 0, %v337
    %v339 = vrot.slane %v334, %v338
    %341 = vmatprep.subr.mxu0 0.0
    %342 = vmatpush1.msra.mxu0 %v317
    %343 = vmatprep.subr.mxu0 0.0
    %344 = vmatpush1.msra.mxu0 %v318
    %345 = vmatprep.subr.mxu0 0.0
    %346 = vmatpush1.msra.mxu0 %v319
    %347 = vmatprep.subr.mxu0 0.0
    %348 = vmatpush1.msra.mxu0 %v320
    %349 = vmatprep.subr.mxu0 0.0
    %350 = vmatpush1.msra.mxu0 %v321
    %351 = vmatprep.subr.mxu0 0.0
    %352 = vmatpush1.msra.mxu0 %v322
    %353 = vmatprep.subr.mxu0 0.0
    %354 = vmatpush1.msra.mxu0 %v323
    %355 = vmatprep.subr.mxu0 0.0
    %356 = vmatpush1.msra.mxu0 %v324
    %357 = vmatprep.subr.mxu0 0.0
    %358 = vmatpush1.msra.mxu0 %v325
    %359 = vmatprep.subr.mxu0 0.0
    %360 = vmatpush1.msra.mxu0 %v326
    %361 = vmatprep.subr.mxu0 0.0
    %362 = vmatpush1.msra.mxu0 %v327
    %363 = vmatprep.subr.mxu0 0.0
    %364 = vmatpush1.msra.mxu0 %v328
    %365 = vmatprep.subr.mxu0 0.0
    %366 = vmatpush1.msra.mxu0 %v329
    %367 = vmatprep.subr.mxu0 0.0
    %368 = vmatpush1.msra.mxu0 %v330
    %369 = vmatprep.subr.mxu0 0.0
    %370 = vmatpush1.msra.mxu0 %v331
    %371 = vmatprep.subr.mxu0 0.0
    %372 = vmatpush1.msra.mxu0 %v332
    %373 = vmatprep.subr.mxu0 0.0
    %374 = vmatpush1.msra.mxu0 0.0
    %375 = vmatprep.subr.mxu0 0.0
    %376 = vmatpush1.msra.mxu0 0.0
    %377 = vmatprep.subr.mxu0 0.0
    %378 = vmatpush1.msra.mxu0 0.0
    %379 = vmatprep.subr.mxu0 0.0
    %380 = vmatpush1.msra.mxu0 0.0
    %381 = vmatprep.subr.mxu0 0.0
    %382 = vmatpush1.msra.mxu0 0.0
    %383 = vmatprep.subr.mxu0 0.0
    %384 = vmatpush1.msra.mxu0 0.0
    %385 = vmatprep.subr.mxu0 0.0
    %386 = vmatpush1.msra.mxu0 0.0
    %387 = vmatprep.subr.mxu0 0.0
    %388 = vmatpush1.msra.mxu0 0.0
    %389 = vmatprep.subr.mxu0 0.0
    %390 = vmatpush1.msra.mxu0 0.0
    %391 = vmatprep.subr.mxu0 0.0
    %392 = vmatpush1.msra.mxu0 0.0
    %393 = vmatprep.subr.mxu0 0.0
    %394 = vmatpush1.msra.mxu0 0.0
    %395 = vmatprep.subr.mxu0 0.0
    %396 = vmatpush1.msra.mxu0 0.0
    %397 = vmatprep.subr.mxu0 0.0
    %398 = vmatpush1.msra.mxu0 0.0
    %399 = vmatprep.subr.mxu0 0.0
    %400 = vmatpush1.msra.mxu0 0.0
    %401 = vmatprep.subr.mxu0 0.0
    %402 = vmatpush1.msra.mxu0 0.0
    %403 = vmatprep.subr.mxu0 0.0
    %404 = vmatpush1.msra.mxu0 0.0
    %405 = vmatprep.mubr.f32.mxu0 0.0
    %406 = vmatmul.mubr.f32.gmra.mrb[0].mxu0 %v315
    %v407 = vpop.f32.mrb[0].mxu0
    %v408 = vadd.f32 %v339, %v407
    %v409 = vpop.f32.mrb[0].mxu0
    %410 = vdwg.mxu0
    %v411 = vmax.f32 %v408, 0.0
    %s412 = scalar_lea.vmem [#allocation2], 512
    %v413 = vld [vmem:[%s412] sm:$0xff]
    %v414 = vld [vmem:[%s412 + $0x8] sm:$0xff]
    %v415 = vld [vmem:[%s412 + $0x10] sm:$0xff]
    %v416 = vld [vmem:[%s412 + $0x18] sm:$0xff]
    %v417 = vld [vmem:[%s412 + $0x20] sm:$0xff]
    %v418 = vld [vmem:[%s412 + $0x28] sm:$0xff]
    %v419 = vld [vmem:[%s412 + $0x30] sm:$0xff]
    %v420 = vld [vmem:[%s412 + $0x38] sm:$0xff]
    %v421 = vld [vmem:[%s412 + $0x40] sm:$0xff]
    %v422 = vld [vmem:[%s412 + $0x48] sm:$0xff]
    %v423 = vld [vmem:[%s412 + $0x50] sm:$0xff]
    %v424 = vld [vmem:[%s412 + $0x58] sm:$0xff]
    %v425 = vld [vmem:[%s412 + $0x60] sm:$0xff]
    %v426 = vld [vmem:[%s412 + $0x68] sm:$0xff]
    %v427 = vld [vmem:[%s412 + $0x70] sm:$0xff]
    %v428 = vld [vmem:[%s412 + $0x78] sm:$0xff]
    %s429 = scalar_lea.vmem %s2, 4
    %v430 = vld [vmem:[%s429] sm:$0x1]
    %v432 = vlaneseq
    %v433 = vshrl.u32 %v432, 7
    %v434 = vsub.s32 0, %v433
    %v435 = vrot.slane %v430, %v434
    %437 = vmatprep.subr.mxu0 0.0
    %438 = vmatpush1.msra.mxu0 %v413
    %439 = vmatprep.subr.mxu0 0.0
    %440 = vmatpush1.msra.mxu0 %v414
    %441 = vmatprep.subr.mxu0 0.0
    %442 = vmatpush1.msra.mxu0 %v415
    %443 = vmatprep.subr.mxu0 0.0
    %444 = vmatpush1.msra.mxu0 %v416
    %445 = vmatprep.subr.mxu0 0.0
    %446 = vmatpush1.msra.mxu0 %v417
    %447 = vmatprep.subr.mxu0 0.0
    %448 = vmatpush1.msra.mxu0 %v418
    %449 = vmatprep.subr.mxu0 0.0
    %450 = vmatpush1.msra.mxu0 %v419
    %451 = vmatprep.subr.mxu0 0.0
    %452 = vmatpush1.msra.mxu0 %v420
    %453 = vmatprep.subr.mxu0 0.0
    %454 = vmatpush1.msra.mxu0 %v421
    %455 = vmatprep.subr.mxu0 0.0
    %456 = vmatpush1.msra.mxu0 %v422
    %457 = vmatprep.subr.mxu0 0.0
    %458 = vmatpush1.msra.mxu0 %v423
    %459 = vmatprep.subr.mxu0 0.0
    %460 = vmatpush1.msra.mxu0 %v424
    %461 = vmatprep.subr.mxu0 0.0
    %462 = vmatpush1.msra.mxu0 %v425
    %463 = vmatprep.subr.mxu0 0.0
    %464 = vmatpush1.msra.mxu0 %v426
    %465 = vmatprep.subr.mxu0 0.0
    %466 = vmatpush1.msra.mxu0 %v427
    %467 = vmatprep.subr.mxu0 0.0
    %468 = vmatpush1.msra.mxu0 %v428
    %469 = vmatprep.subr.mxu0 0.0
    %470 = vmatpush1.msra.mxu0 0.0
    %471 = vmatprep.subr.mxu0 0.0
    %472 = vmatpush1.msra.mxu0 0.0
    %473 = vmatprep.subr.mxu0 0.0
    %474 = vmatpush1.msra.mxu0 0.0
    %475 = vmatprep.subr.mxu0 0.0
    %476 = vmatpush1.msra.mxu0 0.0
    %477 = vmatprep.subr.mxu0 0.0
    %478 = vmatpush1.msra.mxu0 0.0
    %479 = vmatprep.subr.mxu0 0.0
    %480 = vmatpush1.msra.mxu0 0.0
    %481 = vmatprep.subr.mxu0 0.0
    %482 = vmatpush1.msra.mxu0 0.0
    %483 = vmatprep.subr.mxu0 0.0
    %484 = vmatpush1.msra.mxu0 0.0
    %485 = vmatprep.subr.mxu0 0.0
    %486 = vmatpush1.msra.mxu0 0.0
    %487 = vmatprep.subr.mxu0 0.0
    %488 = vmatpush1.msra.mxu0 0.0
    %489 = vmatprep.subr.mxu0 0.0
    %490 = vmatpush1.msra.mxu0 0.0
    %491 = vmatprep.subr.mxu0 0.0
    %492 = vmatpush1.msra.mxu0 0.0
    %493 = vmatprep.subr.mxu0 0.0
    %494 = vmatpush1.msra.mxu0 0.0
    %495 = vmatprep.subr.mxu0 0.0
    %496 = vmatpush1.msra.mxu0 0.0
    %497 = vmatprep.subr.mxu0 0.0
    %498 = vmatpush1.msra.mxu0 0.0
    %499 = vmatprep.subr.mxu0 0.0
    %500 = vmatpush1.msra.mxu0 0.0
    %501 = vmatprep.mubr.f32.mxu0 0.0
    %502 = vmatmul.mubr.f32.gmra.mrb[0].mxu0 %v411
    %v503 = vpop.f32.mrb[0].mxu0
    %v504 = vadd.f32 %v435, %v503
    %v505 = vpop.f32.mrb[0].mxu0
    %506 = vdwg.mxu0
    %v507 = vtanh.pop %v504
    %508 = vst [vmem:[#allocation5] sm:$0xff] %v507
    // Predicated region
    $region18: #{actor_forward_packed.1} parent=1 // pred_check
      _
    $region19: #{actor_forward_packed.1} parent=1 // pred_check_branch
      %510 = sbr.rel (0) target = $region21
    $region20: #{actor_forward_packed.1} parent=1 // pred_region
      %s512 = ssub.s32 128, 128
      %513 = vsyncadd [#allocation4], %s512
      %s515 = sshll.u32 [#allocation5], 4
      %s516 = int_to_ptr.vmem [resolvable:$true] %s515
      %518 = dma.vmem_to_hbm [thread:$0]  %s516, 128, %s3, [#allocation4]
    $region21: #{actor_forward_packed.1} parent=1 // pred_fallthru
      _
    // Predicated region
    $region22: #{actor_forward_packed.1} parent=1 // pred_check
      _
    $region23: #{actor_forward_packed.1} parent=1 // pred_check_branch
      %520 = sbr.rel (0) target = $region25
    $region24: #{actor_forward_packed.1} parent=1 // pred_region
      %521 = dma.done [#allocation4], 128
    $region25: #{actor_forward_packed.1} parent=1 // pred_fallthru
      _
    %522 = vsyncpa [#allocation3], 1
    %523 = vsyncpa [#allocation4], 1

</llo_original>
